<compile_context>
chip_gen: v7x
topology: tpu7x:2x2x1
jax: 0.10.0
libtpu: 0.0.40
codegen_flags: <defaults>
</compile_context>

<pallas_src>
import functools

import jax
import jax.numpy as jnp
from jax.experimental import pallas as pl
from jax.experimental.pallas import tpu as pltpu


_LANES = 128
_SLACK_BYTES = 4 << 20            # allowance for semaphores / rounding
_MIN_VMEM_REQUEST = 16 << 20
_MAX_BLOCK_BYTES = 16 << 20       # soft cap per pipelined block


def _make_divisible(v, divisor=8, min_value=None):
    if min_value is None:
        min_value = divisor
    new_v = max(min_value, int(v + divisor / 2) // divisor * divisor)
    if new_v < 0.9 * v:
        new_v += divisor
    return new_v


# ---------------------------------------------------------------------------
# Generation-aware VMEM budgets (128 MiB on v5e/v6e, 64 MiB on v7x).
# ---------------------------------------------------------------------------
def _vmem_capacity_bytes():
    try:
        return int(pltpu.get_tpu_info().vmem_capacity_bytes)
    except Exception:
        return 64 << 20           # conservative (v7x-sized) fallback


def _vmem_budgets():
    cap = _vmem_capacity_bytes()
    # What we are willing to ask the compiler for: leave ~15% headroom below
    # physical VMEM for compiler-internal scratch / double-buffer rounding
    # (this matters most on v7x's 64 MiB per TensorCore).
    limit_cap = min(int(cap * 0.85), cap - (8 << 20))
    # What our own pipeline buffers are sized against (~48 MiB on v7x,
    # ~96 MiB on v5e/v6e) so far more shapes stay on the single-pass path.
    tile_budget = int(cap * 0.75)
    return cap, limit_cap, tile_budget


def _vmem_limit_bytes(need_bytes, limit_cap, cap):
    want = max(int(need_bytes * 1.5) + _SLACK_BYTES, _MIN_VMEM_REQUEST)
    if want <= limit_cap:
        return int(want)
    return int(min(want, cap))    # exceed the headroom cap only when truly needed


# ---------------------------------------------------------------------------
# Parameter prep (one-time, outside the per-call path).
# ---------------------------------------------------------------------------
def prepare_se_params(w1, b1, w2, b2):
    """w1: (Cr, C), b1: (Cr,), w2: (C, Cr), b2: (C,) in PyTorch nn.Linear layout.

    Returned in row-vector form: pooled activations are kept (bt, C), so both
    FCs are plain (bt, K) @ (K, N) MXU matmuls with no in-kernel transposes.
    """
    return (jnp.asarray(w1, jnp.float32).T,               # (C, Cr)
            jnp.asarray(b1, jnp.float32).reshape(1, -1),   # (1, Cr)
            jnp.asarray(w2, jnp.float32).T,               # (Cr, C)
            jnp.asarray(b2, jnp.float32).reshape(1, -1))   # (1, C)


# ---------------------------------------------------------------------------
# Kernels
# ---------------------------------------------------------------------------
def _attention_rows(pooled_bc, w1t, b1, w2t, b2):
    """pooled_bc: (bt, C) f32 -> hardsigmoid(fc2(relu(fc1(.)))) as (bt, C) f32."""
    h1 = jnp.dot(pooled_bc, w1t, preferred_element_type=jnp.float32) + b1  # (bt, Cr)
    h1 = jnp.maximum(h1, 0.0)
    h2 = jnp.dot(h1, w2t, preferred_element_type=jnp.float32) + b2         # (bt, C)
    # PyTorch Hardsigmoid: relu6(x + 3) / 6 == clip(x / 6 + 0.5, 0, 1)
    return jnp.clip(h2 * (1.0 / 6.0) + 0.5, 0.0, 1.0)


def _se_fused_kernel(x_ref, w1_ref, b1_ref, w2_ref, b2_ref, o_ref, *, inv_hw):
    """Single pass over a (bt, C, HWp) slab: pool + FCs + attention multiply."""
    # f32-accumulated reduction straight off the ref: no shared whole-slab f32
    # temporary (padded zeros contribute nothing; inv_hw uses the real H*W).
    pooled = jnp.sum(x_ref[...], axis=-1, dtype=jnp.float32) * inv_hw      # (bt, C)
    attn = _attention_rows(pooled, w1_ref[...], b1_ref[...],
                           w2_ref[...], b2_ref[...])                       # (bt, C)
    # Native-dtype multiply (bf16 stays bf16); attention broadcasts over lanes.
    o_ref[...] = x_ref[...] * attn[:, :, None].astype(o_ref.dtype)


def _se_attn_kernel(x_ref, w1_ref, b1_ref, w2_ref, b2_ref, attn_ref, acc_ref,
                    *, inv_hw):
    """Tiled pass 1: accumulate HW tiles; emit the attention on the last tile."""
    t = pl.program_id(1)

    @pl.when(t == 0)
    def _():
        acc_ref[...] = jnp.zeros_like(acc_ref)

    acc_ref[...] += jnp.sum(x_ref[...], axis=-1, dtype=jnp.float32)        # (1, C)

    @pl.when(t == pl.num_programs(1) - 1)
    def _():
        pooled = acc_ref[...] * inv_hw     # normalise by the FULL (unpadded) H*W
        attn = _attention_rows(pooled, w1_ref[...], b1_ref[...],
                               w2_ref[...], b2_ref[...])                   # (1, C)
        attn_ref[...] = attn[:, :, None]                                   # (1, C, 1)


def _se_scale_kernel(x_ref, attn_ref, o_ref):
    """Tiled pass 2: pure load-mul-store (attention block stays resident)."""
    o_ref[...] = x_ref[...] * attn_ref[...].astype(o_ref.dtype)


# ---------------------------------------------------------------------------
# Spec / tiling helpers
# ---------------------------------------------------------------------------
def _const_spec(shape, grid_rank):
    zeros = (0,) * len(shape)
    if grid_rank == 1:
        return pl.BlockSpec(shape, lambda i: zeros)
    return pl.BlockSpec(shape, lambda i, j: zeros)


def _weight_specs(params, grid_rank):
    # Constant index maps -> fetched once, resident across all grid steps.
    return [_const_spec(tuple(p.shape), grid_rank) for p in params]


def _maybe_buffered_spec(shape, index_map, depth):
    """BlockSpec with deeper input pipelining where the installed jax supports it."""
    try:
        return pl.BlockSpec(shape, index_map, pipeline_mode=pl.Buffered(depth))
    except (TypeError, AttributeError):
        return pl.BlockSpec(shape, index_map)


def _choose_batch_tile(b, per_batch_pipe_bytes, per_batch_slab_bytes, budget_bytes):
    """Largest divisor of b whose pipelined footprint fits the budget, keeping
    >= 2 grid steps when b >= 2 (megacore) and capping the single-block size so
    the pipeline keeps several steps for prologue/epilogue overlap."""
    best = 1
    for bt in range(1, b + 1):
        if b % bt:
            continue
        if bt * per_batch_pipe_bytes > budget_bytes:
            continue
        if b >= 2 and (b // bt) < 2:
            continue
        if bt > 1 and bt * per_batch_slab_bytes > _MAX_BLOCK_BYTES:
            continue
        best = bt
    return best


def _choose_hw_tile(hw_p, per_elem_bytes, budget_bytes):
    """Largest multiple-of-128 divisor of hw_p whose pipelined footprint fits."""
    assert hw_p % _LANES == 0
    k = hw_p // _LANES
    best = _LANES
    for d in range(1, k + 1):
        if k % d:
            continue
        tile = d * _LANES
        if tile * per_elem_bytes <= budget_bytes:
            best = tile
    return best


# ---------------------------------------------------------------------------
# Wrapper
# ---------------------------------------------------------------------------
def se_module(x_nchw, params, *, hw_tile=None, pad_lanes="auto"):
    """SE forward.  x_nchw: (B, C, H, W) in f32 or bf16; params from
    prepare_se_params().  Returns an array with x_nchw's shape and dtype.

    pad_lanes: "auto" | "always" | "never".  Zero-pads H*W up to a multiple of
    128 so every block / store is lane-dense.  Padding adds an XLA pad + slice
    pass over the tensor, so "auto" only pads when the inflation is small or
    when the spatially-tiled fallback needs 128-aligned tiles.
    """
    if pad_lanes not in ("auto", "always", "never"):
        raise ValueError("pad_lanes must be 'auto', 'always' or 'never'")
    w1t, b1, w2t, b2 = params
    b, c, h, w = x_nchw.shape
    hw = h * w
    x3 = x_nchw.reshape(b, c, hw)                 # NCHW -> (B, C, HW); HW on lanes
    itemsize = x3.dtype.itemsize
    weight_bytes = 4 * (w1t.size + b1.size + w2t.size + b2.size)

    cap, limit_cap, tile_budget = _vmem_budgets()
    budget = max(tile_budget - weight_bytes - _SLACK_BYTES, 0)

    # Per-element byte cost of a fused block: double-buffered in + out, plus a
    # one-copy f32 allowance for kernel-internal temporaries.
    fused_elem_bytes = 4 * itemsize + 4

    def fits_fused(hw_eff):
        return c * hw_eff * fused_elem_bytes <= budget

    # ---- lane-density / padding decision ------------------------------------
    hw_aligned = -(-hw // _LANES) * _LANES
    misaligned = hw % _LANES != 0
    if hw_tile is not None:
        if hw_tile % _LANES:
            raise ValueError("hw_tile must be a multiple of 128")
        hw_p = -(-hw // hw_tile) * hw_tile
    elif pad_lanes == "always":
        hw_p = hw_aligned
    elif pad_lanes == "never":
        hw_p = hw
    else:  # "auto"
        cheap = hw_aligned * 8 <= hw * 9                   # <= 12.5% extra zeros
        fallback_needs_pad = misaligned and not fits_fused(hw)
        hw_p = hw_aligned if (misaligned and (cheap or fallback_needs_pad)) else hw

    inv_hw = 1.0 / hw                                      # mean over the REAL H*W
    x3p = x3 if hw_p == hw else jnp.pad(x3, ((0, 0), (0, 0), (0, hw_p - hw)))

    # Single pass when the slab fits; also when spatial tiling is impossible
    # (pad_lanes="never" with misaligned H*W) - still correct, may spill.
    use_fused = hw_tile is None and (fits_fused(hw_p) or hw_p % _LANES != 0)

    if use_fused:
        slab_bytes = c * hw_p * itemsize
        bt = _choose_batch_tile(b, c * hw_p * fused_elem_bytes, slab_bytes, budget)
        need = 4 * bt * slab_bytes + bt * c * hw_p * 4 + weight_bytes
        out3 = pl.pallas_call(
            functools.partial(_se_fused_kernel, inv_hw=inv_hw),
            grid=(b // bt,),
            in_specs=[pl.BlockSpec((bt, c, hw_p), lambda i: (i, 0, 0))]
                     + _weight_specs(params, 1),
            out_specs=pl.BlockSpec((bt, c, hw_p), lambda i: (i, 0, 0)),
            out_shape=jax.ShapeDtypeStruct((b, c, hw_p), x3.dtype),
            compiler_params=pltpu.CompilerParams(
                dimension_semantics=("parallel",),
                vmem_limit_bytes=_vmem_limit_bytes(need, limit_cap, cap),
            ),
        )(x3p, w1t, b1, w2t, b2)
        out3 = out3 if hw_p == hw else out3[:, :, :hw]
        return out3.reshape(b, c, h, w)

    # ---- spatially tiled two-pass fallback -----------------------------------
    if hw_tile is None:
        # pass 2 is the larger consumer: 3-deep-buffered input + double-buffered
        # output + an f32 temp allowance per element.
        hw_tile = _choose_hw_tile(hw_p, c * (5 * itemsize + 4), budget)
    assert hw_p % hw_tile == 0, "hw_tile must divide the (padded) H*W"
    num_t = hw_p // hw_tile
    tile_bytes = c * hw_tile * itemsize

    # Pass 1: accumulate HW tiles into a resident (1, C) scratch, normalise by
    # the FULL H*W, and emit the attention column on the last tile.
    attn = pl.pallas_call(
        functools.partial(_se_attn_kernel, inv_hw=inv_hw),
        grid=(b, num_t),
        in_specs=[pl.BlockSpec((1, c, hw_tile), lambda bi, ti: (bi, 0, ti))]
                 + _weight_specs(params, 2),
        out_specs=pl.BlockSpec((1, c, 1), lambda bi, ti: (bi, 0, 0)),
        out_shape=jax.ShapeDtypeStruct((b, c, 1), jnp.float32),
        scratch_shapes=[pltpu.VMEM((1, c), jnp.float32)],
        compiler_params=pltpu.CompilerParams(
            dimension_semantics=("parallel", "arbitrary"),
            vmem_limit_bytes=_vmem_limit_bytes(
                2 * tile_bytes + c * hw_tile * 4 + weight_bytes, limit_cap, cap),
        ),
    )(x3p, w1t, b1, w2t, b2)

    # Pass 2: pure streaming multiply; both grid axes parallel, 3-deep input
    # buffering so no DMA latency is exposed.
    out3 = pl.pallas_call(
        _se_scale_kernel,
        grid=(b, num_t),
        in_specs=[
            _maybe_buffered_spec((1, c, hw_tile), lambda bi, ti: (bi, 0, ti), 3),
            pl.BlockSpec((1, c, 1), lambda bi, ti: (bi, 0, 0)),
        ],
        out_specs=pl.BlockSpec((1, c, hw_tile), lambda bi, ti: (bi, 0, ti)),
        out_shape=jax.ShapeDtypeStruct((b, c, hw_p), x3.dtype),
        compiler_params=pltpu.CompilerParams(
            dimension_semantics=("parallel", "parallel"),
            vmem_limit_bytes=_vmem_limit_bytes(
                5 * tile_bytes + c * hw_tile * 4, limit_cap, cap),
        ),
    )(x3p, attn)
    out3 = out3 if hw_p == hw else out3[:, :, :hw]
    return out3.reshape(b, c, h, w)


# ---------------------------------------------------------------------------
# Pure-JAX reference & tests
# ---------------------------------------------------------------------------
if __name__ == "__main__":
    key = jax.random.PRNGKey(0)
    kx, kw1, kb1, kw2, kb2, kx2, kx3, kx4 = jax.random.split(key, 8)

    B, C, H, W = 2, 16, 8, 8
    CR = _make_divisible(C // 4)          # reduced channels = 8

    # PyTorch nn.Linear layout: weight (out, in), bias (out,)
    w1 = jax.random.normal(kw1, (CR, C), dtype=jnp.float32) * 0.1
    b1 = jax.random.normal(kb1, (CR,), dtype=jnp.float32) * 0.1
    w2 = jax.random.normal(kw2, (C, CR), dtype=jnp.float32) * 0.1
    b2 = jax.random.normal(kb2, (C,), dtype=jnp.float32) * 0.1
    params = prepare_se_params(w1, b1, w2, b2)

    def ref(x):
        xf = x.astype(jnp.float32)
        pooled = jnp.mean(xf, axis=(2, 3))                    # (B, C)
        h1 = jnp.maximum(pooled @ w1.T + b1, 0.0)             # (B, Cr)
        h2 = h1 @ w2.T + b2                                   # (B, C)
        attn = jnp.clip(h2 / 6.0 + 0.5, 0.0, 1.0)
        return (xf * attn[:, :, None, None]).astype(x.dtype)

    # 1) fused single-pass path, f32.
    x = jax.random.normal(kx, (B, C, H, W), dtype=jnp.float32)
    out = jax.block_until_ready(se_module(x, params))
    assert out.shape == x.shape and out.dtype == x.dtype
    assert jnp.allclose(out, ref(x), atol=1e-5, rtol=1e-5), "f32 fused mismatch"

    # 2) bf16 activations stay bf16 end-to-end (f32 accumulation in-kernel).
    xb = x.astype(jnp.bfloat16)
    outb = jax.block_until_ready(se_module(xb, params))
    assert outb.dtype == jnp.bfloat16
    assert jnp.allclose(outb.astype(jnp.float32), ref(xb).astype(jnp.float32),
                        atol=5e-2, rtol=5e-2), "bf16 fused mismatch"

    # 3) batch coalescing: B=4 with a lane-aligned HW=128 -> bt=2 blocks.
    x4 = jax.random.normal(kx3, (4, C, 8, 16), dtype=jnp.float32)
    out4 = jax.block_until_ready(se_module(x4, params))
    assert jnp.allclose(out4, ref(x4), atol=1e-5, rtol=1e-5), "coalesced mismatch"

    # 4) lane padding of a misaligned spatial size (9x9 -> 128 padded lanes).
    x9 = jax.random.normal(kx4, (B, C, 9, 9), dtype=jnp.float32)
    out9 = jax.block_until_ready(se_module(x9, params, pad_lanes="always"))
    assert jnp.allclose(out9, ref(x9), atol=1e-5, rtol=1e-5), "padded mismatch"

    # 5) forced spatially-tiled two-pass path (HW=256 split into 128-lane tiles).
    x16 = jax.random.normal(kx2, (B, C, 16, 16), dtype=jnp.float32)
    out16 = jax.block_until_ready(se_module(x16, params, hw_tile=128))
    assert jnp.allclose(out16, ref(x16), atol=1e-5, rtol=1e-5), "tiled mismatch"

    print("KERNEL_OK")
</pallas_src>

<mosaic_0001>
module attributes {stable_mosaic.version = 11 : i64} {
  func.func @_se_fused_kernel(%arg0: i32, %arg1: memref<1x16x64xf32, #tpu.memory_space<vmem>>, %arg2: memref<16x8xf32, #tpu.memory_space<vmem>>, %arg3: memref<1x8xf32, #tpu.memory_space<vmem>>, %arg4: memref<8x16xf32, #tpu.memory_space<vmem>>, %arg5: memref<1x16xf32, #tpu.memory_space<vmem>>, %arg6: memref<1x16x64xf32, #tpu.memory_space<vmem>>) attributes {dimension_semantics = [#tpu.dimension_semantics<parallel>], iteration_bounds = array<i64: 2>, scalar_prefetch = 0 : i64, scratch_operands = 0 : i64, tpu.core_type = #tpu.core_type<tc>, window_params = [{transform_indices = @transform_0, window_bounds = array<i64: 1, 16, 64>}, {pipeline_mode = #tpu.pipeline_mode<synchronous>, transform_indices = @transform_1, window_bounds = array<i64: 16, 8>}, {pipeline_mode = #tpu.pipeline_mode<synchronous>, transform_indices = @transform_2, window_bounds = array<i64: 1, 8>}, {pipeline_mode = #tpu.pipeline_mode<synchronous>, transform_indices = @transform_3, window_bounds = array<i64: 8, 16>}, {pipeline_mode = #tpu.pipeline_mode<synchronous>, transform_indices = @transform_4, window_bounds = array<i64: 1, 16>}, {transform_indices = @transform_5, window_bounds = array<i64: 1, 16, 64>}]} {
    %c0 = arith.constant 0 : index
    %c0_0 = arith.constant 0 : index
    %c0_1 = arith.constant 0 : index
    %0 = vector.load %arg1[%c0, %c0_0, %c0_1] : memref<1x16x64xf32, #tpu.memory_space<vmem>>, vector<1x16x64xf32>
    %cst = arith.constant dense<0.000000e+00> : vector<1x16xf32>
    %1 = vector.multi_reduction <add>, %0, %cst [2] : vector<1x16x64xf32> to vector<1x16xf32>
    %cst_2 = arith.constant 1.562500e-02 : f32
    %2 = vector.broadcast %cst_2 : f32 to vector<1x16xf32>
    %3 = arith.mulf %1, %2 : vector<1x16xf32>
    %c0_3 = arith.constant 0 : index
    %c0_4 = arith.constant 0 : index
    %4 = vector.load %arg2[%c0_3, %c0_4] : memref<16x8xf32, #tpu.memory_space<vmem>>, vector<16x8xf32>
    %c0_5 = arith.constant 0 : index
    %c0_6 = arith.constant 0 : index
    %5 = vector.load %arg3[%c0_5, %c0_6] : memref<1x8xf32, #tpu.memory_space<vmem>>, vector<1x8xf32>
    %c0_7 = arith.constant 0 : index
    %c0_8 = arith.constant 0 : index
    %6 = vector.load %arg4[%c0_7, %c0_8] : memref<8x16xf32, #tpu.memory_space<vmem>>, vector<8x16xf32>
    %c0_9 = arith.constant 0 : index
    %c0_10 = arith.constant 0 : index
    %7 = vector.load %arg5[%c0_9, %c0_10] : memref<1x16xf32, #tpu.memory_space<vmem>>, vector<1x16xf32>
    %cst_11 = arith.constant dense<0.000000e+00> : vector<1x8xf32>
    %8 = tpu.matmul %3, %4, %cst_11 {dimension_numbers = #tpu.dot_dimension_numbers<[1], [0], [0], [1], [0, 0, 1, 1], [], []>} : vector<1x16xf32>, vector<16x8xf32>, vector<1x8xf32> -> vector<1x8xf32>
    %9 = arith.addf %8, %5 : vector<1x8xf32>
    %cst_12 = arith.constant 0.000000e+00 : f32
    %10 = vector.broadcast %cst_12 : f32 to vector<1x8xf32>
    %11 = arith.maximumf %9, %10 : vector<1x8xf32>
    %cst_13 = arith.constant dense<0.000000e+00> : vector<1x16xf32>
    %12 = tpu.matmul %11, %6, %cst_13 {dimension_numbers = #tpu.dot_dimension_numbers<[1], [0], [0], [1], [0, 0, 1, 1], [], []>} : vector<1x8xf32>, vector<8x16xf32>, vector<1x16xf32> -> vector<1x16xf32>
    %13 = arith.addf %12, %7 : vector<1x16xf32>
    %cst_14 = arith.constant 0.166666672 : f32
    %14 = vector.broadcast %cst_14 : f32 to vector<1x16xf32>
    %15 = arith.mulf %13, %14 : vector<1x16xf32>
    %cst_15 = arith.constant 5.000000e-01 : f32
    %16 = vector.broadcast %cst_15 : f32 to vector<1x16xf32>
    %17 = arith.addf %15, %16 : vector<1x16xf32>
    %cst_16 = arith.constant 0.000000e+00 : f32
    %cst_17 = arith.constant 1.000000e+00 : f32
    %18 = vector.broadcast %cst_16 : f32 to vector<1x16xf32>
    %19 = arith.maximumf %18, %17 : vector<1x16xf32>
    %20 = vector.broadcast %cst_17 : f32 to vector<1x16xf32>
    %21 = arith.minimumf %20, %19 : vector<1x16xf32>
    %c0_18 = arith.constant 0 : index
    %c0_19 = arith.constant 0 : index
    %c0_20 = arith.constant 0 : index
    %22 = vector.load %arg1[%c0_18, %c0_19, %c0_20] : memref<1x16x64xf32, #tpu.memory_space<vmem>>, vector<1x16x64xf32>
    %23 = vector.shape_cast %21 : vector<1x16xf32> to vector<1x16x1xf32>
    %24 = vector.broadcast %23 : vector<1x16x1xf32> to vector<1x16x64xf32>
    %25 = arith.mulf %22, %24 : vector<1x16x64xf32>
    %c0_21 = arith.constant 0 : index
    %c0_22 = arith.constant 0 : index
    %c0_23 = arith.constant 0 : index
    %26 = vector.load %arg6[%c0_21, %c0_22, %c0_23] : memref<1x16x64xf32, #tpu.memory_space<vmem>>, vector<1x16x64xf32>
    tpu.vector_store %arg6[%c0_21, %c0_22, %c0_23], %25 {strides = array<i32>} : memref<1x16x64xf32, #tpu.memory_space<vmem>>, vector<1x16x64xf32>,
    return
  }
  func.func @transform_0(%arg0: i32) -> (i32, i32, i32) {
    %c0_i32 = arith.constant 0 : i32
    %c0_i32_0 = arith.constant 0 : i32
    %c0_i32_1 = arith.constant 0 : i32
    return %arg0, %c0_i32, %c0_i32_0 : i32, i32, i32
  }
  func.func @transform_1(%arg0: i32) -> (i32, i32) {
    %c0_i32 = arith.constant 0 : i32
    %c0_i32_0 = arith.constant 0 : i32
    %c0_i32_1 = arith.constant 0 : i32
    return %c0_i32, %c0_i32_0 : i32, i32
  }
  func.func @transform_2(%arg0: i32) -> (i32, i32) {
    %c0_i32 = arith.constant 0 : i32
    %c0_i32_0 = arith.constant 0 : i32
    %c0_i32_1 = arith.constant 0 : i32
    return %c0_i32, %c0_i32_0 : i32, i32
  }
  func.func @transform_3(%arg0: i32) -> (i32, i32) {
    %c0_i32 = arith.constant 0 : i32
    %c0_i32_0 = arith.constant 0 : i32
    %c0_i32_1 = arith.constant 0 : i32
    return %c0_i32, %c0_i32_0 : i32, i32
  }
  func.func @transform_4(%arg0: i32) -> (i32, i32) {
    %c0_i32 = arith.constant 0 : i32
    %c0_i32_0 = arith.constant 0 : i32
    %c0_i32_1 = arith.constant 0 : i32
    return %c0_i32, %c0_i32_0 : i32, i32
  }
  func.func @transform_5(%arg0: i32) -> (i32, i32, i32) {
    %c0_i32 = arith.constant 0 : i32
    %c0_i32_0 = arith.constant 0 : i32
    %c0_i32_1 = arith.constant 0 : i32
    return %arg0, %c0_i32, %c0_i32_0 : i32, i32, i32
  }
}

</mosaic_0001>

<llo_original>
// kernel: tpu_custom_call.1
$region0: #{tpu_custom_call.1}
  #allocation0 [shape = 'u32[]', space=smem, size = 0x4, offset = 0x4, fixed_abs, tag = 'smem constant byte address 0x4 - core index']
  #allocation1 [shape = 'u32[144,128]{1,0:T(1,128)}', space=vmem, size = 0x12000, scoped, tag = 'internal scratch']
  %s0 = inlined_call_operand.hbm [shape: f32[2,16,64], index: 0, kind: input, shape index: {}]
  %s1 = inlined_call_operand.vmem [shape: f32[16,8], index: 1, kind: input, shape index: {}]
  %s2 = inlined_call_operand.vmem [shape: f32[1,8], index: 2, kind: input, shape index: {}]
  %s3 = inlined_call_operand.vmem [shape: f32[8,16], index: 3, kind: input, shape index: {}]
  %s4 = inlined_call_operand.vmem [shape: f32[1,16], index: 4, kind: input, shape index: {}]
  %s5 = inlined_call_operand.hbm [shape: f32[2,16,64], index: 5, kind: output, shape index: {}]
  %s6 = sld [smem:[#allocation0]]
  $region57: #{tpu_custom_call.1} parent=0
    _
  %s8 = ssub.s32 1, %s6
  %s9 = scalar_select 0, %s8, %s6
  $region1: #{tpu_custom_call.1} parent=0
    #allocation2 [shape = 'u8[16384]{0}', space=vmem, size = 0x4000, scoped, tag = 'input window, operand 0']
    #allocation3 [shape = 's32[2]{0}', space=sflag, size = 0x8, scoped, tag = 'scoped memory for tpu_custom_call.1']
    #allocation4 [shape = 's32[2]{0}', space=sflag, size = 0x8, scoped, tag = 'scoped memory for tpu_custom_call.1']
    #allocation5 [shape = 'u8[16384]{0}', space=vmem, size = 0x4000, scoped, tag = 'output window, operand 0']
    %10 = vsyncpa [#allocation3], 0
    %s11 = scalar_lea.sflag [#allocation3], 1
    %12 = vsyncpa %s11, 0
    %13 = vsyncpa [#allocation4], 0
    %s14 = scalar_lea.sflag [#allocation4], 1
    %15 = vsyncpa %s14, 0
    loop: start=0, step=1, limit=4
    $region2: #{tpu_custom_call.1} parent=1 // loop_pre_header
      _
    $region3: #{tpu_custom_call.1} parent=1 // loop_header
      %s17 = sphi 0, %s21
      %p18 = scmp.ge.s32.totalorder %s17, 4
      %s27 = sphi 0, %s29
      %s30 = sphi 0, %s27
      %s31 = sphi 0, %s30
      %s47 = sphi 0, %s31
      %s51 = sphi 0, %s51
      %s53 = sphi 0, %s51
      %s54 = sphi 0, %s53
      %s68 = sphi 0, %s54
      %s72 = sphi 0, %s72
      %s74 = sphi 0, %s72
      %s75 = sphi 0, %s74
      %s89 = sphi 0, %s75
      %s93 = sphi 0, %s93
      %s95 = sphi 0, %s93
      %s96 = sphi 0, %s95
      %s110 = sphi 0, %s96
      %s114 = sphi 0, %s114
      %s116 = sphi 0, %s114
      %s117 = sphi 0, %s116
      %s131 = sphi 0, %s117
      %s137 = sphi 0, %s139
      %s140 = sphi 0, %s137
      %s141 = sphi 0, %s140
      %s157 = sphi 0, %s141
    $region4: #{tpu_custom_call.1} parent=1 // loop_header_branch
      %20 = sbr.rel (%p18) target = $region8
    $region5: #{tpu_custom_call.1} parent=1 // loop_body
      %s22 = ssub.s32 %s17, 1
      %s23 = ssub.s32 %s17, 2
      %s24 = sadd.s32 %s17, 1
      %s25 = ssub.s32 %s17, %s24
      %p26 = scmp.eq.s32.totalorder %s25, 0
      %s28 = sadd.s32 %s27, 1
      %s29 = scalar_select %p26, %s27, %s28
      %p32 = pneg %p26
      %p33 = scmp.eq.s32.totalorder %s17, 1
      %p34 = por %p32, %p33
      %p35 = scmp.ne.s32.totalorder %s27, %s30
      %p36 = scmp.eq.s32.totalorder %s17, 0
      %p37 = por %p35, %p36
      %p38 = scmp.ne.s32.totalorder %s27, %s30
      %p39 = scmp.eq.s32.totalorder %s22, 1
      %p40 = por %p38, %p39
      %p41 = scmp.ne.s32.totalorder %s30, %s31
      %p42 = scmp.eq.s32.totalorder %s22, 0
      %p43 = por %p41, %p42
      %p44 = scmp.ne.s32.totalorder %s30, %s31
      %p45 = scmp.eq.s32.totalorder %s23, 1
      %p46 = por %p44, %p45
      %p48 = scmp.ne.s32.totalorder %s31, %s47
      %p49 = scmp.eq.s32.totalorder %s23, 0
      %p50 = por %p48, %p49
      %s52 = sadd.s32 %s51, 1
      %p55 = scmp.eq.s32.totalorder %s17, 1
      %p56 = scmp.ne.s32.totalorder %s51, %s53
      %p57 = scmp.eq.s32.totalorder %s17, 0
      %p58 = por %p56, %p57
      %p59 = scmp.ne.s32.totalorder %s51, %s53
      %p60 = scmp.eq.s32.totalorder %s22, 1
      %p61 = por %p59, %p60
      %p62 = scmp.ne.s32.totalorder %s53, %s54
      %p63 = scmp.eq.s32.totalorder %s22, 0
      %p64 = por %p62, %p63
      %p65 = scmp.ne.s32.totalorder %s53, %s54
      %p66 = scmp.eq.s32.totalorder %s23, 1
      %p67 = por %p65, %p66
      %p69 = scmp.ne.s32.totalorder %s54, %s68
      %p70 = scmp.eq.s32.totalorder %s23, 0
      %p71 = por %p69, %p70
      %s73 = sadd.s32 %s72, 1
      %p76 = scmp.eq.s32.totalorder %s17, 1
      %p77 = scmp.ne.s32.totalorder %s72, %s74
      %p78 = scmp.eq.s32.totalorder %s17, 0
      %p79 = por %p77, %p78
      %p80 = scmp.ne.s32.totalorder %s72, %s74
      %p81 = scmp.eq.s32.totalorder %s22, 1
      %p82 = por %p80, %p81
      %p83 = scmp.ne.s32.totalorder %s74, %s75
      %p84 = scmp.eq.s32.totalorder %s22, 0
      %p85 = por %p83, %p84
      %p86 = scmp.ne.s32.totalorder %s74, %s75
      %p87 = scmp.eq.s32.totalorder %s23, 1
      %p88 = por %p86, %p87
      %p90 = scmp.ne.s32.totalorder %s75, %s89
      %p91 = scmp.eq.s32.totalorder %s23, 0
      %p92 = por %p90, %p91
      %s94 = sadd.s32 %s93, 1
      %p97 = scmp.eq.s32.totalorder %s17, 1
      %p98 = scmp.ne.s32.totalorder %s93, %s95
      %p99 = scmp.eq.s32.totalorder %s17, 0
      %p100 = por %p98, %p99
      %p101 = scmp.ne.s32.totalorder %s93, %s95
      %p102 = scmp.eq.s32.totalorder %s22, 1
      %p103 = por %p101, %p102
      %p104 = scmp.ne.s32.totalorder %s95, %s96
      %p105 = scmp.eq.s32.totalorder %s22, 0
      %p106 = por %p104, %p105
      %p107 = scmp.ne.s32.totalorder %s95, %s96
      %p108 = scmp.eq.s32.totalorder %s23, 1
      %p109 = por %p107, %p108
      %p111 = scmp.ne.s32.totalorder %s96, %s110
      %p112 = scmp.eq.s32.totalorder %s23, 0
      %p113 = por %p111, %p112
      %s115 = sadd.s32 %s114, 1
      %p118 = scmp.eq.s32.totalorder %s17, 1
      %p119 = scmp.ne.s32.totalorder %s114, %s116
      %p120 = scmp.eq.s32.totalorder %s17, 0
      %p121 = por %p119, %p120
      %p122 = scmp.ne.s32.totalorder %s114, %s116
      %p123 = scmp.eq.s32.totalorder %s22, 1
      %p124 = por %p122, %p123
      %p125 = scmp.ne.s32.totalorder %s116, %s117
      %p126 = scmp.eq.s32.totalorder %s22, 0
      %p127 = por %p125, %p126
      %p128 = scmp.ne.s32.totalorder %s116, %s117
      %p129 = scmp.eq.s32.totalorder %s23, 1
      %p130 = por %p128, %p129
      %p132 = scmp.ne.s32.totalorder %s117, %s131
      %p133 = scmp.eq.s32.totalorder %s23, 0
      %p134 = por %p132, %p133
      %s135 = ssub.s32 %s17, %s24
      %p136 = scmp.eq.s32.totalorder %s135, 0
      %s138 = sadd.s32 %s137, 1
      %s139 = scalar_select %p136, %s137, %s138
      %p142 = pneg %p136
      %p143 = scmp.eq.s32.totalorder %s17, 1
      %p144 = por %p142, %p143
      %p145 = scmp.ne.s32.totalorder %s137, %s140
      %p146 = scmp.eq.s32.totalorder %s17, 0
      %p147 = por %p145, %p146
      %p148 = scmp.ne.s32.totalorder %s137, %s140
      %p149 = scmp.eq.s32.totalorder %s22, 1
      %p150 = por %p148, %p149
      %p151 = scmp.ne.s32.totalorder %s140, %s141
      %p152 = scmp.eq.s32.totalorder %s22, 0
      %p153 = por %p151, %p152
      %p154 = scmp.ne.s32.totalorder %s140, %s141
      %p155 = scmp.eq.s32.totalorder %s23, 1
      %p156 = por %p154, %p155
      %p158 = scmp.ne.s32.totalorder %s141, %s157
      %p159 = scmp.eq.s32.totalorder %s23, 0
      %p160 = por %p158, %p159
      %p161 = scmp.le.s32.totalorder 1, %s17
      %p162 = scmp.lt.s32.totalorder %s17, 3
      %p163 = pnand %p161, %p162
      %p164 = pneg %p163
      // Predicated region
      $region9: #{tpu_custom_call.1} parent=5 // pred_check
        _
      $region10: #{tpu_custom_call.1} parent=5 // pred_check_branch
        %166 = sbr.rel (%p163) target = $region12
      $region11: #{tpu_custom_call.1} parent=5 // pred_region
        %s167 = ssub.s32 %s17, 1
        // Predicated region
        $region13: #{tpu_custom_call.1} parent=11 // pred_check
          %p168 = pneg %p64
        $region14: #{tpu_custom_call.1} parent=11 // pred_check_branch
          %170 = sbr.rel (%p168) target = $region16
        $region15: #{tpu_custom_call.1} parent=11 // pred_region
          _
        $region16: #{tpu_custom_call.1} parent=11 // pred_fallthru
          _
        // Predicated region
        $region17: #{tpu_custom_call.1} parent=11 // pred_check
          %p171 = pneg %p85
        $region18: #{tpu_custom_call.1} parent=11 // pred_check_branch
          %173 = sbr.rel (%p171) target = $region20
        $region19: #{tpu_custom_call.1} parent=11 // pred_region
          _
        $region20: #{tpu_custom_call.1} parent=11 // pred_fallthru
          _
        // Predicated region
        $region21: #{tpu_custom_call.1} parent=11 // pred_check
          %p174 = pneg %p106
        $region22: #{tpu_custom_call.1} parent=11 // pred_check_branch
          %176 = sbr.rel (%p174) target = $region24
        $region23: #{tpu_custom_call.1} parent=11 // pred_region
          _
        $region24: #{tpu_custom_call.1} parent=11 // pred_fallthru
          _
        // Predicated region
        $region25: #{tpu_custom_call.1} parent=11 // pred_check
          %p177 = pneg %p127
        $region26: #{tpu_custom_call.1} parent=11 // pred_check_branch
          %179 = sbr.rel (%p177) target = $region28
        $region27: #{tpu_custom_call.1} parent=11 // pred_region
          _
        $region28: #{tpu_custom_call.1} parent=11 // pred_fallthru
          _
      $region12: #{tpu_custom_call.1} parent=5 // pred_fallthru
        _
      %p180 = scmp.lt.s32.totalorder %s17, 2
      // Predicated region
      $region29: #{tpu_custom_call.1} parent=5 // pred_check
        %p181 = pneg %p180
      $region30: #{tpu_custom_call.1} parent=5 // pred_check_branch
        %183 = sbr.rel (%p181) target = $region32
      $region31: #{tpu_custom_call.1} parent=5 // pred_region
        // Predicated region
        $region33: #{tpu_custom_call.1} parent=31 // pred_check
          %p184 = pneg %p37
        $region34: #{tpu_custom_call.1} parent=31 // pred_check_branch
          %186 = sbr.rel (%p184) target = $region36
        $region35: #{tpu_custom_call.1} parent=31 // pred_region
          %s187 = sand.u32 %s27, 1
          %s188 = scalar_lea.sflag [#allocation3], %s187
          %s189 = sand.u32 %s27, 1
          %s190 = smul.addr %s189, 16
          %s191 = scalar_lea.vmem [#allocation2], %s190
          %s193 = ssub.s32 256, 256
          %194 = vsyncadd %s188, %s193
          %s195 = smul.addr %s17, 2
          %s196 = smul.addr %s195, 128
          %s197 = scalar_lea.hbm %s0, %s196
          %s198 = sshll.u32 %s191, 4
          %s199 = int_to_ptr.vmem [resolvable:$true] %s198
          %204 = dma.hbm_to_vmem [thread:$0]  %s197, 256, %s199, %s188, 128, 128, 8
        $region36: #{tpu_custom_call.1} parent=31 // pred_fallthru
          _
      $region32: #{tpu_custom_call.1} parent=5 // pred_fallthru
        _
      %p205 = scmp.le.s32.totalorder 1, %s17
      %p206 = scmp.lt.s32.totalorder %s17, 3
      %p207 = pnand %p205, %p206
      %p208 = pneg %p207
      // Predicated region
      $region37: #{tpu_custom_call.1} parent=5 // pred_check
        _
      $region38: #{tpu_custom_call.1} parent=5 // pred_check_branch
        %210 = sbr.rel (%p207) target = $region40
      $region39: #{tpu_custom_call.1} parent=5 // pred_region
        %s211 = ssub.s32 %s17, 1
        %s212 = sand.u32 %s30, 1
        %s213 = scalar_lea.sflag [#allocation3], %s212
        %s214 = sand.u32 %s30, 1
        %s215 = smul.addr %s214, 16
        %s216 = scalar_lea.vmem [#allocation2], %s215
        // Predicated region
        $region41: #{tpu_custom_call.1} parent=39 // pred_check
          %p217 = pneg %p43
        $region42: #{tpu_custom_call.1} parent=39 // pred_check_branch
          %219 = sbr.rel (%p217) target = $region44
        $region43: #{tpu_custom_call.1} parent=39 // pred_region
          %220 = dma.done %s213, 256
        $region44: #{tpu_custom_call.1} parent=39 // pred_fallthru
          _
        %s221 = sand.u32 %s30, 1
        %s222 = scalar_lea.sflag [#allocation3], %s221
        %s223 = sand.u32 %s30, 1
        %s224 = smul.addr %s223, 16
        %s225 = scalar_lea.vmem [#allocation2], %s224
        %p226 = pneg %p43
        %p227 = pneg %p40
        %p228 = pneg %p64
        %p229 = pneg %p61
        %p230 = pneg %p85
        %p231 = pneg %p82
        %p232 = pneg %p106
        %p233 = pneg %p103
        %p234 = pneg %p127
        %p235 = pneg %p124
        %p236 = pneg %p153
        %p237 = pneg %p150
        %s238 = sand.u32 %s140, 1
        %s239 = scalar_lea.sflag [#allocation4], %s238
        %s240 = sand.u32 %s140, 1
        %s241 = smul.addr %s240, 16
        %s242 = scalar_lea.vmem [#allocation5], %s241
        %v243 = vld [vmem:[%s216] sm:$0xff]
        %v244 = vld [vmem:[%s216 + $0x8] sm:$0xff]
        %vm245 = vcmask 523264
        %v246 = vsel %vm245, %v243, 0.0
        %247 = vadd.xlane.f32.xlu0 %v246
        %v248 = vpop.xlane.xlu0 %247
        %v249 = vsel %vm245, %v244, 0.0
        %250 = vadd.xlane.f32.xlu0 %v249
        %v251 = vpop.xlane.xlu0 %250
        %v252 = vmul.f32 %v248, 0.015625
        %v253 = vmul.f32 %v251, 0.015625
        %v254 = vld [vmem:[%s1] sm:$0xff]
        %v255 = vld [vmem:[%s1 + $0x8] sm:$0xff]
        %v256 = vld [vmem:[%s2] sm:$0x1]
        %v257 = vld [vmem:[%s3] sm:$0xff]
        %v258 = vld [vmem:[%s4] sm:$0x1]
        %v261 = vlaneseq
        %v262 = vand.u32 %v261, 127
        %v263 = vlaneseq
        %v264 = vshrl.u32 %v263, 7
        %v265 = vsub.s32 %v262, %v264
        %v266 = vrot.slane %v252, %v265
        %v267 = vadd.s32 %v262, 4294967288
        %v268 = vlaneseq
        %v269 = vshrl.u32 %v268, 7
        %v270 = vsub.s32 %v267, %v269
        %v271 = vrot.slane %v253, %v270
        %vm272 = vcmask 130112
        %v273 = vsel %vm272, %v271, %v266
        %vm274 = vcmask 130048
        %v275 = vsel %vm274, %v273, 0
        %277 = vmatprep.subr.mxu0 0.0
        %278 = vmatpush1.msra.mxu0 %v254
        %279 = vmatprep.subr.mxu0 0.0
        %280 = vmatpush1.msra.mxu0 %v255
        %281 = vmatprep.subr.mxu0 0.0
        %282 = vmatpush1.msra.mxu0 0.0
        %283 = vmatprep.subr.mxu0 0.0
        %284 = vmatpush1.msra.mxu0 0.0
        %285 = vmatprep.subr.mxu0 0.0
        %286 = vmatpush1.msra.mxu0 0.0
        %287 = vmatprep.subr.mxu0 0.0
        %288 = vmatpush1.msra.mxu0 0.0
        %289 = vmatprep.subr.mxu0 0.0
        %290 = vmatpush1.msra.mxu0 0.0
        %291 = vmatprep.subr.mxu0 0.0
        %292 = vmatpush1.msra.mxu0 0.0
        %293 = vmatprep.subr.mxu0 0.0
        %294 = vmatpush1.msra.mxu0 0.0
        %295 = vmatprep.subr.mxu0 0.0
        %296 = vmatpush1.msra.mxu0 0.0
        %297 = vmatprep.subr.mxu0 0.0
        %298 = vmatpush1.msra.mxu0 0.0
        %299 = vmatprep.subr.mxu0 0.0
        %300 = vmatpush1.msra.mxu0 0.0
        %301 = vmatprep.subr.mxu0 0.0
        %302 = vmatpush1.msra.mxu0 0.0
        %303 = vmatprep.subr.mxu0 0.0
        %304 = vmatpush1.msra.mxu0 0.0
        %305 = vmatprep.subr.mxu0 0.0
        %306 = vmatpush1.msra.mxu0 0.0
        %307 = vmatprep.subr.mxu0 0.0
        %308 = vmatpush1.msra.mxu0 0.0
        %309 = vmatprep.subr.mxu0 0.0
        %310 = vmatpush1.msra.mxu0 0.0
        %311 = vmatprep.subr.mxu0 0.0
        %312 = vmatpush1.msra.mxu0 0.0
        %313 = vmatprep.subr.mxu0 0.0
        %314 = vmatpush1.msra.mxu0 0.0
        %315 = vmatprep.subr.mxu0 0.0
        %316 = vmatpush1.msra.mxu0 0.0
        %317 = vmatprep.subr.mxu0 0.0
        %318 = vmatpush1.msra.mxu0 0.0
        %319 = vmatprep.subr.mxu0 0.0
        %320 = vmatpush1.msra.mxu0 0.0
        %321 = vmatprep.subr.mxu0 0.0
        %322 = vmatpush1.msra.mxu0 0.0
        %323 = vmatprep.subr.mxu0 0.0
        %324 = vmatpush1.msra.mxu0 0.0
        %325 = vmatprep.subr.mxu0 0.0
        %326 = vmatpush1.msra.mxu0 0.0
        %327 = vmatprep.subr.mxu0 0.0
        %328 = vmatpush1.msra.mxu0 0.0
        %329 = vmatprep.subr.mxu0 0.0
        %330 = vmatpush1.msra.mxu0 0.0
        %331 = vmatprep.subr.mxu0 0.0
        %332 = vmatpush1.msra.mxu0 0.0
        %333 = vmatprep.subr.mxu0 0.0
        %334 = vmatpush1.msra.mxu0 0.0
        %335 = vmatprep.subr.mxu0 0.0
        %336 = vmatpush1.msra.mxu0 0.0
        %337 = vmatprep.subr.mxu0 0.0
        %338 = vmatpush1.msra.mxu0 0.0
        %339 = vmatprep.subr.mxu0 0.0
        %340 = vmatpush1.msra.mxu0 0.0
        %341 = vmatprep.mubr.f32.mxu0 0.0
        %342 = vmatmul.mubr.f32.gmra.mrb[0].mxu0 %v275
        %v343 = vpop.f32.mrb[0].mxu0
        %v344 = vadd.f32 %v256, %v343
        %v345 = vpop.f32.mrb[0].mxu0
        %346 = vdwg.mxu0
        %v347 = vmax.f32 %v344, 0.0
        %vm348 = vcmask 64512
        %v350 = vsel %vm348, %v347, 0
        %352 = vmatprep.subr.mxu0 0.0
        %353 = vmatpush1.msra.mxu0 %v257
        %354 = vmatprep.subr.mxu0 0.0
        %355 = vmatpush1.msra.mxu0 0.0
        %356 = vmatprep.subr.mxu0 0.0
        %357 = vmatpush1.msra.mxu0 0.0
        %358 = vmatprep.subr.mxu0 0.0
        %359 = vmatpush1.msra.mxu0 0.0
        %360 = vmatprep.subr.mxu0 0.0
        %361 = vmatpush1.msra.mxu0 0.0
        %362 = vmatprep.subr.mxu0 0.0
        %363 = vmatpush1.msra.mxu0 0.0
        %364 = vmatprep.subr.mxu0 0.0
        %365 = vmatpush1.msra.mxu0 0.0
        %366 = vmatprep.subr.mxu0 0.0
        %367 = vmatpush1.msra.mxu0 0.0
        %368 = vmatprep.subr.mxu0 0.0
        %369 = vmatpush1.msra.mxu0 0.0
        %370 = vmatprep.subr.mxu0 0.0
        %371 = vmatpush1.msra.mxu0 0.0
        %372 = vmatprep.subr.mxu0 0.0
        %373 = vmatpush1.msra.mxu0 0.0
        %374 = vmatprep.subr.mxu0 0.0
        %375 = vmatpush1.msra.mxu0 0.0
        %376 = vmatprep.subr.mxu0 0.0
        %377 = vmatpush1.msra.mxu0 0.0
        %378 = vmatprep.subr.mxu0 0.0
        %379 = vmatpush1.msra.mxu0 0.0
        %380 = vmatprep.subr.mxu0 0.0
        %381 = vmatpush1.msra.mxu0 0.0
        %382 = vmatprep.subr.mxu0 0.0
        %383 = vmatpush1.msra.mxu0 0.0
        %384 = vmatprep.subr.mxu0 0.0
        %385 = vmatpush1.msra.mxu0 0.0
        %386 = vmatprep.subr.mxu0 0.0
        %387 = vmatpush1.msra.mxu0 0.0
        %388 = vmatprep.subr.mxu0 0.0
        %389 = vmatpush1.msra.mxu0 0.0
        %390 = vmatprep.subr.mxu0 0.0
        %391 = vmatpush1.msra.mxu0 0.0
        %392 = vmatprep.subr.mxu0 0.0
        %393 = vmatpush1.msra.mxu0 0.0
        %394 = vmatprep.subr.mxu0 0.0
        %395 = vmatpush1.msra.mxu0 0.0
        %396 = vmatprep.subr.mxu0 0.0
        %397 = vmatpush1.msra.mxu0 0.0
        %398 = vmatprep.subr.mxu0 0.0
        %399 = vmatpush1.msra.mxu0 0.0
        %400 = vmatprep.subr.mxu0 0.0
        %401 = vmatpush1.msra.mxu0 0.0
        %402 = vmatprep.subr.mxu0 0.0
        %403 = vmatpush1.msra.mxu0 0.0
        %404 = vmatprep.subr.mxu0 0.0
        %405 = vmatpush1.msra.mxu0 0.0
        %406 = vmatprep.subr.mxu0 0.0
        %407 = vmatpush1.msra.mxu0 0.0
        %408 = vmatprep.subr.mxu0 0.0
        %409 = vmatpush1.msra.mxu0 0.0
        %410 = vmatprep.subr.mxu0 0.0
        %411 = vmatpush1.msra.mxu0 0.0
        %412 = vmatprep.subr.mxu0 0.0
        %413 = vmatpush1.msra.mxu0 0.0
        %414 = vmatprep.subr.mxu0 0.0
        %415 = vmatpush1.msra.mxu0 0.0
        %416 = vmatprep.mubr.f32.mxu0 0.0
        %417 = vmatmul.mubr.f32.gmra.mrb[0].mxu0 %v350
        %v418 = vpop.f32.mrb[0].mxu0
        %v419 = vadd.f32 %v258, %v418
        %v420 = vpop.f32.mrb[0].mxu0
        %421 = vdwg.mxu0
        %v422 = vmul.f32 %v419, 0.16666667
        %v423 = vadd.f32 %v422, 0.5
        %v424 = vmax.f32 %v423, 0.0
        %v425 = vmin.f32 %v424, 1.0
        %v426 = vlaneseq
        %v427 = vshrl.u32 %v426, 7
        %v428 = vsub.s32 0, %v427
        %v429 = vrot.slane %v425, %v428
        %431 = vbcast.lane.b32.xlu0 %v429, 256
        %v432 = vpop.permute.xlu0 %431
        %s434 = sor.u32 256, 8
        %435 = vbcast.lane.b32.xlu0 %v429, %s434
        %v436 = vpop.permute.xlu0 %435
        %v437 = vmul.f32 %v243, %v432
        %v438 = vmul.f32 %v244, %v436
        %439 = vst.msk [vmem:[%s242] sm:$0xff] %vm245, %v437
        %440 = vst.msk [vmem:[%s242 + $0x8] sm:$0xff] %vm245, %v438
        %s441 = sand.u32 %s140, 1
        %s442 = scalar_lea.sflag [#allocation4], %s441
        %s443 = sand.u32 %s140, 1
        %s444 = smul.addr %s443, 16
        %s445 = scalar_lea.vmem [#allocation5], %s444
        // Predicated region
        $region45: #{tpu_custom_call.1} parent=39 // pred_check
          %p446 = pneg %p150
        $region46: #{tpu_custom_call.1} parent=39 // pred_check_branch
          %448 = sbr.rel (%p446) target = $region48
        $region47: #{tpu_custom_call.1} parent=39 // pred_region
          %s450 = ssub.s32 256, 256
          %451 = vsyncadd %s442, %s450
          %s452 = smul.addr %s22, 2
          %s453 = smul.addr %s452, 128
          %s454 = scalar_lea.hbm %s5, %s453
          %s455 = sshll.u32 %s445, 4
          %s456 = int_to_ptr.vmem [resolvable:$true] %s455
          %461 = dma.vmem_to_hbm [thread:$0]  %s456, 256, %s454, %s442, 128, 128, 8
        $region48: #{tpu_custom_call.1} parent=39 // pred_fallthru
          _
      $region40: #{tpu_custom_call.1} parent=5 // pred_fallthru
        _
      %p462 = scmp.le.s32.totalorder 2, %s17
      // Predicated region
      $region49: #{tpu_custom_call.1} parent=5 // pred_check
        %p463 = pneg %p462
      $region50: #{tpu_custom_call.1} parent=5 // pred_check_branch
        %465 = sbr.rel (%p463) target = $region52
      $region51: #{tpu_custom_call.1} parent=5 // pred_region
        %s466 = ssub.s32 %s17, 2
        // Predicated region
        $region53: #{tpu_custom_call.1} parent=51 // pred_check
          %p467 = pneg %p156
        $region54: #{tpu_custom_call.1} parent=51 // pred_check_branch
          %469 = sbr.rel (%p467) target = $region56
        $region55: #{tpu_custom_call.1} parent=51 // pred_region
          %s470 = sand.u32 %s141, 1
          %s471 = scalar_lea.sflag [#allocation4], %s470
          %s472 = sand.u32 %s141, 1
          %s473 = smul.addr %s472, 16
          %s474 = scalar_lea.vmem [#allocation5], %s473
          %475 = dma.done %s471, 256
        $region56: #{tpu_custom_call.1} parent=51 // pred_fallthru
          _
      $region52: #{tpu_custom_call.1} parent=5 // pred_fallthru
        _
    $region6: #{tpu_custom_call.1} parent=1 // loop_footer
      %s21 = sadd.s32 1, %s17
    $region7: #{tpu_custom_call.1} parent=1 // loop_footer_branch
      %16 = sbr.rel target = $region3
    $region8: #{tpu_custom_call.1} parent=1 // loop_exit
      _
    %476 = vsyncpa [#allocation3], 1
    %s477 = scalar_lea.sflag [#allocation3], 1
    %478 = vsyncpa %s477, 1
    %479 = vsyncpa [#allocation4], 1
    %s480 = scalar_lea.sflag [#allocation4], 1
    %481 = vsyncpa %s480, 1

</llo_original>
